<compile_context>
chip_gen: v5e
topology: v5e:2x2
jax: 0.10.0
libtpu: 0.0.40
codegen_flags: <defaults>
</compile_context>

<pallas_src>
import jax
import jax.numpy as jnp
from jax.experimental import pallas as pl
from jax.experimental.pallas import tpu as pltpu


def _round_up(n, m):
    return ((n + m - 1) // m) * m


def _force_predictor_kernel(xv_ref, w1_ref, b1_ref, w2_ref, b2_ref, out_ref):
    # fc1 on r batch rows packed per lane-row: [rows, r*D_in] @ [r*D_in, r*H]
    h = jnp.dot(xv_ref[...], w1_ref[...], preferred_element_type=jnp.float32)
    h = jnp.maximum(h + b1_ref[...], 0.0)            # bias + ReLU on VPU, f32
    # fc2: [rows, r*H] @ [r*H, r*D_out]
    o = jnp.dot(h, w2_ref[...], preferred_element_type=jnp.float32)
    out_ref[...] = (o + b2_ref[...]).astype(out_ref.dtype)


def force_predictor(x, w1, b1, w2, b2, *, vmem_budget_bytes=18 << 20):
    """x: [B, D_in]; w1: [D_in, H]; b1: [H]; w2: [H, D_out]; b2: [D_out]."""
    B, D_in = x.shape
    H = w1.shape[1]
    D_out = w2.shape[1]
    dtype = x.dtype
    itemsize = jnp.dtype(dtype).itemsize

    # Replication factor: pack r batch rows per 128-lane VMEM row (free reshape
    # of the contiguous [B, D_in] buffer -> no extra HBM pass over x).
    r = 128 // D_in if (D_in <= 128 and 128 % D_in == 0) else 1

    # Pad batch only up to a multiple of r (copies x only in that rare case).
    B_pad = _round_up(B, r)
    if B_pad != B:
        x = jnp.pad(x, ((0, B_pad - B), (0, 0)))
    rows = B_pad // r
    xv = x.reshape(rows, r * D_in)                    # free bitcast-reshape

    # Block-diagonal replicated weights / tiled biases (tiny, VMEM-resident).
    eye_r = jnp.eye(r, dtype=dtype)
    w1r = jnp.kron(eye_r, w1.astype(dtype))           # [r*D_in, r*H]
    w2r = jnp.kron(eye_r, w2.astype(dtype))           # [r*H,   r*D_out]
    b1r = jnp.tile(b1.astype(dtype), r)[None, :]      # [1, r*H]
    b2r = jnp.tile(b2.astype(dtype), r)[None, :]      # [1, r*D_out]

    # VMEM-aware tile: double-buffered x, f32 h, double-buffered out per row.
    bytes_per_row = r * (2 * D_in * itemsize + H * 4 + 2 * D_out * itemsize)
    max_rows = max(8, (vmem_budget_bytes // bytes_per_row) // 8 * 8)
    if rows <= 8:
        tile_rows = rows                               # single block == full dim
    else:
        # >=2 grid steps (v7x megacore), sublane-aligned, capped by VMEM budget.
        tile_rows = min(max_rows, _round_up(pl.cdiv(rows, 2), 8))
    n_tiles = pl.cdiv(rows, tile_rows)                 # ragged last block is OK

    weight_bytes = (w1r.size + w2r.size + b1r.size + b2r.size) * itemsize
    vmem_est = tile_rows * bytes_per_row + 2 * weight_bytes
    vmem_limit = int(min(48 << 20, max(32 << 20, 2 * vmem_est)))

    cost = pl.CostEstimate(
        flops=2 * B_pad * (D_in * H + H * D_out),
        transcendentals=0,
        bytes_accessed=(B_pad * (D_in + D_out)) * itemsize + weight_bytes,
    )

    out_v = pl.pallas_call(
        _force_predictor_kernel,
        out_shape=jax.ShapeDtypeStruct((rows, r * D_out), dtype),
        grid=(n_tiles,),
        in_specs=[
            # Streamed per-tile activations: natural layout, lane-dense.
            pl.BlockSpec((tile_rows, r * D_in), lambda i: (i, 0)),
            # Tiny weights/biases: constant index_map -> fetched once.
            pl.BlockSpec((r * D_in, r * H), lambda i: (0, 0)),
            pl.BlockSpec((1, r * H), lambda i: (0, 0)),
            pl.BlockSpec((r * H, r * D_out), lambda i: (0, 0)),
            pl.BlockSpec((1, r * D_out), lambda i: (0, 0)),
        ],
        out_specs=pl.BlockSpec((tile_rows, r * D_out), lambda i: (i, 0)),
        compiler_params=pltpu.CompilerParams(
            dimension_semantics=("parallel",),
            vmem_limit_bytes=vmem_limit,
        ),
        cost_estimate=cost,
    )(xv, w1r, b1r, w2r, b2r)

    # Free reshape back to natural [B_pad, D_out]; drop the (tiny) r-padding.
    return out_v.reshape(B_pad, D_out)[:B]


def init_params(key, input_dim, hidden_dim, output_dim):
    """Deterministic init mimicking nn.Linear's uniform(-1/sqrt(fan_in), 1/sqrt(fan_in))."""
    k1, k2, k3, k4 = jax.random.split(key, 4)
    lim1 = 1.0 / jnp.sqrt(jnp.float32(input_dim))
    lim2 = 1.0 / jnp.sqrt(jnp.float32(hidden_dim))
    # Stored already transposed relative to nn.Linear: [in_features, out_features]
    w1 = jax.random.uniform(k1, (input_dim, hidden_dim), jnp.float32, -lim1, lim1)
    b1 = jax.random.uniform(k2, (hidden_dim,), jnp.float32, -lim1, lim1)
    w2 = jax.random.uniform(k3, (hidden_dim, output_dim), jnp.float32, -lim2, lim2)
    b2 = jax.random.uniform(k4, (output_dim,), jnp.float32, -lim2, lim2)
    return w1, b1, w2, b2


def _reference(x, w1, b1, w2, b2):
    return jnp.maximum(x @ w1 + b1, 0.0) @ w2 + b2


if __name__ == "__main__":
    key = jax.random.PRNGKey(0)
    kx, kp = jax.random.split(key)

    batch, input_dim, hidden_dim, output_dim = 8, 16, 32, 4
    x = jax.random.normal(kx, (batch, input_dim), jnp.float32)
    w1, b1, w2, b2 = init_params(kp, input_dim, hidden_dim, output_dim)

    out = jax.block_until_ready(force_predictor(x, w1, b1, w2, b2))
    ref = _reference(x, w1, b1, w2, b2)
    assert out.shape == (batch, output_dim)
    assert jnp.allclose(out, ref, atol=1e-5, rtol=1e-5)

    # Larger batch: exercises the multi-tile grid with a ragged last block.
    xb = jax.random.normal(kx, (3000, input_dim), jnp.float32)
    outb = jax.block_until_ready(force_predictor(xb, w1, b1, w2, b2))
    assert outb.shape == (3000, output_dim)
    assert jnp.allclose(outb, _reference(xb, w1, b1, w2, b2), atol=1e-5, rtol=1e-5)

    # Batch not divisible by the replication factor: exercises the r-pad path.
    xc = jax.random.normal(kx, (13, input_dim), jnp.float32)
    outc = jax.block_until_ready(force_predictor(xc, w1, b1, w2, b2))
    assert outc.shape == (13, output_dim)
    assert jnp.allclose(outc, _reference(xc, w1, b1, w2, b2), atol=1e-5, rtol=1e-5)

    print("KERNEL_OK")
</pallas_src>

<mosaic_0001>
module attributes {stable_mosaic.version = 11 : i64} {
  func.func @_force_predictor_kernel(%arg0: i32, %arg1: memref<1x128xf32, #tpu.memory_space<vmem>>, %arg2: memref<128x256xf32, #tpu.memory_space<vmem>>, %arg3: memref<1x256xf32, #tpu.memory_space<vmem>>, %arg4: memref<256x32xf32, #tpu.memory_space<vmem>>, %arg5: memref<1x32xf32, #tpu.memory_space<vmem>>, %arg6: memref<1x32xf32, #tpu.memory_space<vmem>>) attributes {dimension_semantics = [#tpu.dimension_semantics<parallel>], iteration_bounds = array<i64: 1>, scalar_prefetch = 0 : i64, scratch_operands = 0 : i64, tpu.core_type = #tpu.core_type<tc>, window_params = [{transform_indices = @transform_0, window_bounds = array<i64: 1, 128>}, {pipeline_mode = #tpu.pipeline_mode<synchronous>, transform_indices = @transform_1, window_bounds = array<i64: 128, 256>}, {pipeline_mode = #tpu.pipeline_mode<synchronous>, transform_indices = @transform_2, window_bounds = array<i64: 1, 256>}, {pipeline_mode = #tpu.pipeline_mode<synchronous>, transform_indices = @transform_3, window_bounds = array<i64: 256, 32>}, {pipeline_mode = #tpu.pipeline_mode<synchronous>, transform_indices = @transform_4, window_bounds = array<i64: 1, 32>}, {transform_indices = @transform_5, window_bounds = array<i64: 1, 32>}]} {
    %c0 = arith.constant 0 : index
    %c0_0 = arith.constant 0 : index
    %0 = vector.load %arg1[%c0, %c0_0] : memref<1x128xf32, #tpu.memory_space<vmem>>, vector<1x128xf32>
    %c0_1 = arith.constant 0 : index
    %c0_2 = arith.constant 0 : index
    %1 = vector.load %arg2[%c0_1, %c0_2] : memref<128x256xf32, #tpu.memory_space<vmem>>, vector<128x256xf32>
    %cst = arith.constant dense<0.000000e+00> : vector<1x256xf32>
    %2 = tpu.matmul %0, %1, %cst {dimension_numbers = #tpu.dot_dimension_numbers<[1], [0], [0], [1], [0, 0, 1, 1], [], []>} : vector<1x128xf32>, vector<128x256xf32>, vector<1x256xf32> -> vector<1x256xf32>
    %c0_3 = arith.constant 0 : index
    %c0_4 = arith.constant 0 : index
    %3 = vector.load %arg3[%c0_3, %c0_4] : memref<1x256xf32, #tpu.memory_space<vmem>>, vector<1x256xf32>
    %4 = arith.addf %2, %3 : vector<1x256xf32>
    %cst_5 = arith.constant 0.000000e+00 : f32
    %5 = vector.broadcast %cst_5 : f32 to vector<1x256xf32>
    %6 = arith.maximumf %4, %5 : vector<1x256xf32>
    %c0_6 = arith.constant 0 : index
    %c0_7 = arith.constant 0 : index
    %7 = vector.load %arg4[%c0_6, %c0_7] : memref<256x32xf32, #tpu.memory_space<vmem>>, vector<256x32xf32>
    %cst_8 = arith.constant dense<0.000000e+00> : vector<1x32xf32>
    %8 = tpu.matmul %6, %7, %cst_8 {dimension_numbers = #tpu.dot_dimension_numbers<[1], [0], [0], [1], [0, 0, 1, 1], [], []>} : vector<1x256xf32>, vector<256x32xf32>, vector<1x32xf32> -> vector<1x32xf32>
    %c0_9 = arith.constant 0 : index
    %c0_10 = arith.constant 0 : index
    %9 = vector.load %arg5[%c0_9, %c0_10] : memref<1x32xf32, #tpu.memory_space<vmem>>, vector<1x32xf32>
    %10 = arith.addf %8, %9 : vector<1x32xf32>
    %c0_11 = arith.constant 0 : index
    %c0_12 = arith.constant 0 : index
    %11 = vector.load %arg6[%c0_11, %c0_12] : memref<1x32xf32, #tpu.memory_space<vmem>>, vector<1x32xf32>
    tpu.vector_store %arg6[%c0_11, %c0_12], %10 {strides = array<i32>} : memref<1x32xf32, #tpu.memory_space<vmem>>, vector<1x32xf32>,
    return
  }
  func.func @transform_0(%arg0: i32) -> (i32, i32) {
    %c0_i32 = arith.constant 0 : i32
    %c0_i32_0 = arith.constant 0 : i32
    return %arg0, %c0_i32 : i32, i32
  }
  func.func @transform_1(%arg0: i32) -> (i32, i32) {
    %c0_i32 = arith.constant 0 : i32
    %c0_i32_0 = arith.constant 0 : i32
    %c0_i32_1 = arith.constant 0 : i32
    return %c0_i32, %c0_i32_0 : i32, i32
  }
  func.func @transform_2(%arg0: i32) -> (i32, i32) {
    %c0_i32 = arith.constant 0 : i32
    %c0_i32_0 = arith.constant 0 : i32
    %c0_i32_1 = arith.constant 0 : i32
    return %c0_i32, %c0_i32_0 : i32, i32
  }
  func.func @transform_3(%arg0: i32) -> (i32, i32) {
    %c0_i32 = arith.constant 0 : i32
    %c0_i32_0 = arith.constant 0 : i32
    %c0_i32_1 = arith.constant 0 : i32
    return %c0_i32, %c0_i32_0 : i32, i32
  }
  func.func @transform_4(%arg0: i32) -> (i32, i32) {
    %c0_i32 = arith.constant 0 : i32
    %c0_i32_0 = arith.constant 0 : i32
    %c0_i32_1 = arith.constant 0 : i32
    return %c0_i32, %c0_i32_0 : i32, i32
  }
  func.func @transform_5(%arg0: i32) -> (i32, i32) {
    %c0_i32 = arith.constant 0 : i32
    %c0_i32_0 = arith.constant 0 : i32
    return %arg0, %c0_i32 : i32, i32
  }
}

</mosaic_0001>

<llo_original>
// kernel: tpu_custom_call.1
$region0: #{tpu_custom_call.1}
  #allocation0 [shape = 'u32[]', space=smem, size = 0x4, offset = 0x4, fixed_abs, tag = 'smem constant byte address 0x4 - core index']
  #allocation1 [shape = 'u32[72,128]{1,0:T(1,128)}', space=vmem, size = 0x9000, scoped, tag = 'internal scratch']
  %s0 = inlined_call_operand.vmem [shape: f32[1,128], index: 0, kind: input, shape index: {}]
  %s1 = inlined_call_operand.vmem [shape: f32[128,256], index: 1, kind: input, shape index: {}]
  %s2 = inlined_call_operand.vmem [shape: f32[1,256], index: 2, kind: input, shape index: {}]
  %s3 = inlined_call_operand.vmem [shape: f32[256,32], index: 3, kind: input, shape index: {}]
  %s4 = inlined_call_operand.vmem [shape: f32[1,32], index: 4, kind: input, shape index: {}]
  %s5 = inlined_call_operand.hbm [shape: f32[1,32], index: 5, kind: output, shape index: {}]
  %s6 = sld [smem:[#allocation0]]
  $region30: #{tpu_custom_call.1} parent=0
    _
  %s8 = ssub.s32 1, %s6
  %s9 = scalar_select 0, %s8, %s6
  $region1: #{tpu_custom_call.1} parent=0
    #allocation2 [shape = 'u8[512]{0}', space=vmem, size = 0x400, scoped, tag = 'output window, operand 0, single buffered']
    #allocation3 [shape = 's32[1]{0}', space=sflag, size = 0x4, scoped, tag = 'scoped memory for tpu_custom_call.1']
    %10 = vsyncpa [#allocation3], 0
    // Predicated region
    $region2: #{tpu_custom_call.1} parent=1 // pred_check
      _
    $region3: #{tpu_custom_call.1} parent=1 // pred_check_branch
      %12 = sbr.rel (0) target = $region5
    $region4: #{tpu_custom_call.1} parent=1 // pred_region
      _
    $region5: #{tpu_custom_call.1} parent=1 // pred_fallthru
      _
    // Predicated region
    $region6: #{tpu_custom_call.1} parent=1 // pred_check
      _
    $region7: #{tpu_custom_call.1} parent=1 // pred_check_branch
      %14 = sbr.rel (0) target = $region9
    $region8: #{tpu_custom_call.1} parent=1 // pred_region
      _
    $region9: #{tpu_custom_call.1} parent=1 // pred_fallthru
      _
    // Predicated region
    $region10: #{tpu_custom_call.1} parent=1 // pred_check
      _
    $region11: #{tpu_custom_call.1} parent=1 // pred_check_branch
      %16 = sbr.rel (0) target = $region13
    $region12: #{tpu_custom_call.1} parent=1 // pred_region
      _
    $region13: #{tpu_custom_call.1} parent=1 // pred_fallthru
      _
    // Predicated region
    $region14: #{tpu_custom_call.1} parent=1 // pred_check
      _
    $region15: #{tpu_custom_call.1} parent=1 // pred_check_branch
      %18 = sbr.rel (0) target = $region17
    $region16: #{tpu_custom_call.1} parent=1 // pred_region
      _
    $region17: #{tpu_custom_call.1} parent=1 // pred_fallthru
      _
    // Predicated region
    $region18: #{tpu_custom_call.1} parent=1 // pred_check
      _
    $region19: #{tpu_custom_call.1} parent=1 // pred_check_branch
      %20 = sbr.rel (0) target = $region21
    $region20: #{tpu_custom_call.1} parent=1 // pred_region
      _
    $region21: #{tpu_custom_call.1} parent=1 // pred_fallthru
      _
    %v21 = vld [vmem:[%s0] sm:$0x1]
    %v22 = vld [vmem:[%s1] sm:$0xff]
    %v23 = vld [vmem:[%s1 + $0x8] sm:$0xff]
    %v24 = vld [vmem:[%s1 + $0x10] sm:$0xff]
    %v25 = vld [vmem:[%s1 + $0x18] sm:$0xff]
    %v26 = vld [vmem:[%s1 + $0x20] sm:$0xff]
    %v27 = vld [vmem:[%s1 + $0x28] sm:$0xff]
    %v28 = vld [vmem:[%s1 + $0x30] sm:$0xff]
    %v29 = vld [vmem:[%s1 + $0x38] sm:$0xff]
    %v30 = vld [vmem:[%s1 + $0x40] sm:$0xff]
    %v31 = vld [vmem:[%s1 + $0x48] sm:$0xff]
    %v32 = vld [vmem:[%s1 + $0x50] sm:$0xff]
    %v33 = vld [vmem:[%s1 + $0x58] sm:$0xff]
    %v34 = vld [vmem:[%s1 + $0x60] sm:$0xff]
    %v35 = vld [vmem:[%s1 + $0x68] sm:$0xff]
    %v36 = vld [vmem:[%s1 + $0x70] sm:$0xff]
    %v37 = vld [vmem:[%s1 + $0x78] sm:$0xff]
    %v38 = vld [vmem:[%s1 + $0x80] sm:$0xff]
    %v39 = vld [vmem:[%s1 + $0x88] sm:$0xff]
    %v40 = vld [vmem:[%s1 + $0x90] sm:$0xff]
    %v41 = vld [vmem:[%s1 + $0x98] sm:$0xff]
    %v42 = vld [vmem:[%s1 + $0xa0] sm:$0xff]
    %v43 = vld [vmem:[%s1 + $0xa8] sm:$0xff]
    %v44 = vld [vmem:[%s1 + $0xb0] sm:$0xff]
    %v45 = vld [vmem:[%s1 + $0xb8] sm:$0xff]
    %v46 = vld [vmem:[%s1 + $0xc0] sm:$0xff]
    %v47 = vld [vmem:[%s1 + $0xc8] sm:$0xff]
    %v48 = vld [vmem:[%s1 + $0xd0] sm:$0xff]
    %v49 = vld [vmem:[%s1 + $0xd8] sm:$0xff]
    %v50 = vld [vmem:[%s1 + $0xe0] sm:$0xff]
    %v51 = vld [vmem:[%s1 + $0xe8] sm:$0xff]
    %v52 = vld [vmem:[%s1 + $0xf0] sm:$0xff]
    %v53 = vld [vmem:[%s1 + $0xf8] sm:$0xff]
    %v54 = vld [vmem:[%s2] sm:$0x3]
    %v56 = vperm.slane %v54, 0
    %v57 = vperm.slane %v54, 1
    %60 = vmatpush.msra.mxu0 %v52
    %61 = vmatpush.msra.mxu0 %v50
    %62 = vmatpush.msra.mxu0 %v48
    %63 = vmatpush.msra.mxu0 %v46
    %64 = vmatpush.msra.mxu0 %v44
    %65 = vmatpush.msra.mxu0 %v42
    %66 = vmatpush.msra.mxu0 %v40
    %67 = vmatpush.msra.mxu0 %v38
    %68 = vmatpush.msra.mxu0 %v36
    %69 = vmatpush.msra.mxu0 %v34
    %70 = vmatpush.msra.mxu0 %v32
    %71 = vmatpush.msra.mxu0 %v30
    %72 = vmatpush.msra.mxu0 %v28
    %73 = vmatpush.msra.mxu0 %v26
    %74 = vmatpush.msra.mxu0 %v24
    %75 = vmatpush.msra.mxu0 %v22
    %76 = vmatmul.f32.gmra.mxu0 %v21
    %v77 = vpop.f32.mrf.mxu0
    %v78 = vadd.f32 %v56, %v77
    %79 = vdwg.mxu0
    %80 = vmatpush.msra.mxu0 %v53
    %81 = vmatpush.msra.mxu0 %v51
    %82 = vmatpush.msra.mxu0 %v49
    %83 = vmatpush.msra.mxu0 %v47
    %84 = vmatpush.msra.mxu0 %v45
    %85 = vmatpush.msra.mxu0 %v43
    %86 = vmatpush.msra.mxu0 %v41
    %87 = vmatpush.msra.mxu0 %v39
    %88 = vmatpush.msra.mxu0 %v37
    %89 = vmatpush.msra.mxu0 %v35
    %90 = vmatpush.msra.mxu0 %v33
    %91 = vmatpush.msra.mxu0 %v31
    %92 = vmatpush.msra.mxu0 %v29
    %93 = vmatpush.msra.mxu0 %v27
    %94 = vmatpush.msra.mxu0 %v25
    %95 = vmatpush.msra.mxu0 %v23
    %96 = vmatmul.f32.gmra.mxu0 %v21
    %v97 = vpop.f32.mrf.mxu0
    %v98 = vadd.f32 %v57, %v97
    %99 = vdwg.mxu0
    %v100 = vmax.f32 %v78, 0.0
    %v101 = vmax.f32 %v98, 0.0
    %v102 = vld [vmem:[%s3] sm:$0xff]
    %v103 = vld [vmem:[%s3 + $0x8] sm:$0xff]
    %v104 = vld [vmem:[%s3 + $0x10] sm:$0xff]
    %v105 = vld [vmem:[%s3 + $0x18] sm:$0xff]
    %v106 = vld [vmem:[%s3 + $0x20] sm:$0xff]
    %v107 = vld [vmem:[%s3 + $0x28] sm:$0xff]
    %v108 = vld [vmem:[%s3 + $0x30] sm:$0xff]
    %v109 = vld [vmem:[%s3 + $0x38] sm:$0xff]
    %v110 = vld [vmem:[%s3 + $0x40] sm:$0xff]
    %v111 = vld [vmem:[%s3 + $0x48] sm:$0xff]
    %v112 = vld [vmem:[%s3 + $0x50] sm:$0xff]
    %v113 = vld [vmem:[%s3 + $0x58] sm:$0xff]
    %v114 = vld [vmem:[%s3 + $0x60] sm:$0xff]
    %v115 = vld [vmem:[%s3 + $0x68] sm:$0xff]
    %v116 = vld [vmem:[%s3 + $0x70] sm:$0xff]
    %v117 = vld [vmem:[%s3 + $0x78] sm:$0xff]
    %v118 = vld [vmem:[%s3 + $0x80] sm:$0xff]
    %v119 = vld [vmem:[%s3 + $0x88] sm:$0xff]
    %v120 = vld [vmem:[%s3 + $0x90] sm:$0xff]
    %v121 = vld [vmem:[%s3 + $0x98] sm:$0xff]
    %v122 = vld [vmem:[%s3 + $0xa0] sm:$0xff]
    %v123 = vld [vmem:[%s3 + $0xa8] sm:$0xff]
    %v124 = vld [vmem:[%s3 + $0xb0] sm:$0xff]
    %v125 = vld [vmem:[%s3 + $0xb8] sm:$0xff]
    %v126 = vld [vmem:[%s3 + $0xc0] sm:$0xff]
    %v127 = vld [vmem:[%s3 + $0xc8] sm:$0xff]
    %v128 = vld [vmem:[%s3 + $0xd0] sm:$0xff]
    %v129 = vld [vmem:[%s3 + $0xd8] sm:$0xff]
    %v130 = vld [vmem:[%s3 + $0xe0] sm:$0xff]
    %v131 = vld [vmem:[%s3 + $0xe8] sm:$0xff]
    %v132 = vld [vmem:[%s3 + $0xf0] sm:$0xff]
    %v133 = vld [vmem:[%s3 + $0xf8] sm:$0xff]
    %v134 = vld [vmem:[%s4] sm:$0x1]
    %135 = vmatpush.msra.mxu0 %v117
    %136 = vmatpush.msra.mxu0 %v116
    %137 = vmatpush.msra.mxu0 %v115
    %138 = vmatpush.msra.mxu0 %v114
    %139 = vmatpush.msra.mxu0 %v113
    %140 = vmatpush.msra.mxu0 %v112
    %141 = vmatpush.msra.mxu0 %v111
    %142 = vmatpush.msra.mxu0 %v110
    %143 = vmatpush.msra.mxu0 %v109
    %144 = vmatpush.msra.mxu0 %v108
    %145 = vmatpush.msra.mxu0 %v107
    %146 = vmatpush.msra.mxu0 %v106
    %147 = vmatpush.msra.mxu0 %v105
    %148 = vmatpush.msra.mxu0 %v104
    %149 = vmatpush.msra.mxu0 %v103
    %150 = vmatpush.msra.mxu0 %v102
    %151 = vmatmul.f32.gmra.mxu0 %v100
    %v152 = vpop.f32.mrf.mxu0
    %v153 = vadd.f32 %v134, %v152
    %154 = vdwg.mxu0
    %155 = vmatpush.msra.mxu0 %v133
    %156 = vmatpush.msra.mxu0 %v132
    %157 = vmatpush.msra.mxu0 %v131
    %158 = vmatpush.msra.mxu0 %v130
    %159 = vmatpush.msra.mxu0 %v129
    %160 = vmatpush.msra.mxu0 %v128
    %161 = vmatpush.msra.mxu0 %v127
    %162 = vmatpush.msra.mxu0 %v126
    %163 = vmatpush.msra.mxu0 %v125
    %164 = vmatpush.msra.mxu0 %v124
    %165 = vmatpush.msra.mxu0 %v123
    %166 = vmatpush.msra.mxu0 %v122
    %167 = vmatpush.msra.mxu0 %v121
    %168 = vmatpush.msra.mxu0 %v120
    %169 = vmatpush.msra.mxu0 %v119
    %170 = vmatpush.msra.mxu0 %v118
    %171 = vmatmul.f32.gmra.mxu0 %v101
    %v172 = vpop.f32.mrf.mxu0
    %v173 = vadd.f32 %v153, %v172
    %174 = vdwg.mxu0
    %vm175 = vcmask 253952
    %176 = vst.msk [vmem:[#allocation2] sm:$0x1] %vm175, %v173
    // Predicated region
    $region22: #{tpu_custom_call.1} parent=1 // pred_check
      _
    $region23: #{tpu_custom_call.1} parent=1 // pred_check_branch
      %178 = sbr.rel (0) target = $region25
    $region24: #{tpu_custom_call.1} parent=1 // pred_region
      %180 = vsyncadd [#allocation3], 0
      %s182 = sshll.u32 [#allocation2], 4
      %s183 = int_to_ptr.vmem [resolvable:$true] %s182
      %s184 = sshll.u32 %s5, 4
      %s185 = int_to_ptr.hbm [resolvable:$true] %s184
      %187 = dma.vmem_to_hbm [thread:$0]  %s183, 16, %s185, [#allocation3]
    $region25: #{tpu_custom_call.1} parent=1 // pred_fallthru
      _
    // Predicated region
    $region26: #{tpu_custom_call.1} parent=1 // pred_check
      _
    $region27: #{tpu_custom_call.1} parent=1 // pred_check_branch
      %189 = sbr.rel (0) target = $region29
    $region28: #{tpu_custom_call.1} parent=1 // pred_region
      %191 = dma.done [#allocation3], 16
    $region29: #{tpu_custom_call.1} parent=1 // pred_fallthru
      _
    %192 = vsyncpa [#allocation3], 1

</llo_original>
